<compile_context>
chip_gen: v7x
topology: tpu7x:2x2x1
jax: 0.10.0
libtpu: 0.0.40
codegen_flags: <defaults>
</compile_context>

<pallas_src>
import jax
import jax.numpy as jnp
from jax import lax
from jax.experimental import pallas as pl
from jax.experimental.pallas import tpu as pltpu

_LANE = 128


def _round_up(x, m):
    return (x + m - 1) // m * m


def _choose_tile_n(n, c, itemsize, target_block_bytes=2 << 20):
    """Row tile sized in bytes (~2 MiB per activation block).

    * big enough to amortize the ~0.35 us per-grid-step overhead and reach
      the HBM roofline even on v7x (fastest HBM exposes overhead soonest);
    * capped at ~ceil(N/2) (rounded to 128) so the grid keeps >= 2 steps and
      both v7x TensorCores get work (no-op on v5e/v6e);
    * multiple of 128 => lane-dense output blocks are legal when grid > 1 and
      the sublane multiple (8 f32 / 16 bf16 / 32 int8) is satisfied for any
      activation dtype;
    * 2 inputs x 2 pipeline buffers x 2 MiB = 8 MiB of activation VMEM, well
      under v5e's 16 MiB scoped default and v7x's 64 MiB physical VMEM.
    """
    tile = target_block_bytes // max(1, c * itemsize)
    half_n = -(-n // 2)                       # keep grid >= 2 for v7x megacore
    tile = min(tile, _round_up(half_n, _LANE))
    return max(_LANE, _round_up(tile, _LANE))


def _link_predictor_kernel(zs_ref, zd_ref, w_ref, b_ref, wf_ref, bf_ref,
                           out_ref):
    c = w_ref.shape[1]  # in_channels (w_ref is the fused (2C, C) weight)

    # Fused src/dst linear.  The (2C, C) weight is resident in VMEM; static
    # slices of the ref are free views.  Accumulate in f32 on the MXU.
    h = jnp.dot(zs_ref[...], w_ref[:c, :], preferred_element_type=jnp.float32)
    h = h + jnp.dot(zd_ref[...], w_ref[c:, :],
                    preferred_element_type=jnp.float32)

    # Pre-summed bias (b_src + b_dst) and ReLU, all in f32 on the VPU.
    h = jnp.maximum(h + b_ref[...], 0.0)

    # Final (C -> 1) projection, produced lane-dense: (1, C) x (tile_n, C)^T
    # -> (1, tile_n) on the MXU (plenty of slack), written as a dense row.
    scores = lax.dot_general(wf_ref[...], h,
                             dimension_numbers=(((1,), (1,)), ((), ())),
                             preferred_element_type=jnp.float32)
    out_ref[...] = (scores + bf_ref[0, 0]).astype(out_ref.dtype)


def link_predictor_forward(z_src, z_dst, params, *, tile_n=None):
    """lin_final(relu(lin_src(z_src) + lin_dst(z_dst))) -> (N, 1) float32.

    params:
      w_cat   (2C, C): [w_src ; w_dst] stacked, pre-transposed to (in, out)
      b_sum   (1, C) : b_src + b_dst (float32)
      w_final (1, C) : final projection weight as a row (float32)
      b_final (1, 1) : float32 (kept in SMEM)

    Fast path: pass bf16 z_src/z_dst (cast at the producer) and bf16 w_cat;
    accumulation and all VPU work stay f32.
    """
    n, c = z_src.shape
    assert z_dst.shape == (n, c)
    w_cat, b_sum = params["w_cat"], params["b_sum"]
    w_final, b_final = params["w_final"], params["b_final"]
    assert w_cat.shape == (2 * c, c)

    act_itemsize = jnp.dtype(z_src.dtype).itemsize
    if tile_n is None:
        tile_n = _choose_tile_n(n, c, act_itemsize)
    else:
        # Multiple of 128 keeps the lane-dense output block legal and covers
        # the sublane multiple for f32 (8) / bf16 (16) / int8 (32).
        tile_n = max(_LANE, _round_up(tile_n, _LANE))

    num_tiles = pl.cdiv(n, tile_n)  # ragged last block handled by Pallas:
    n_pad = num_tiles * tile_n      # garbage tail rows are row-independent
    grid = (num_tiles,)             # and sliced off below (no jnp.pad pass).

    # Activations: one (tile_n, C) block per grid step.
    act_spec = pl.BlockSpec((tile_n, c), lambda i: (i, 0))
    # Weights / biases: constant block index -> DMA'd once, resident in VMEM.
    resident = lambda shape: pl.BlockSpec(shape, lambda i: (0, 0))

    flops = (2 * n_pad * (2 * c) * c      # fused src/dst matmul
             + 2 * n_pad * c              # final projection
             + 3 * n_pad * c)             # bias + relu + bias
    bytes_accessed = (2 * n * c * act_itemsize                       # z_src, z_dst
                      + w_cat.size * jnp.dtype(w_cat.dtype).itemsize  # weights
                      + (b_sum.size + w_final.size + b_final.size) * 4
                      + n_pad * 4)                                    # output

    out = pl.pallas_call(
        _link_predictor_kernel,
        out_shape=jax.ShapeDtypeStruct((1, n_pad), jnp.float32),
        grid=grid,
        in_specs=[
            act_spec,                    # z_src tile
            act_spec,                    # z_dst tile
            resident((2 * c, c)),        # fused src/dst weight
            resident((1, c)),            # pre-summed bias
            resident((1, c)),            # final weight row
            pl.BlockSpec(memory_space=pltpu.MemorySpace.SMEM),  # final bias
        ],
        # Lane-dense output: (1, tile_n) blocks of a (1, N_pad) row.
        out_specs=pl.BlockSpec((1, tile_n), lambda i: (0, i)),
        compiler_params=pltpu.CompilerParams(
            dimension_semantics=("parallel",)),
        cost_estimate=pl.CostEstimate(
            flops=flops, transcendentals=0, bytes_accessed=bytes_accessed),
    )(z_src, z_dst, w_cat, b_sum, w_final, b_final)
    return out.reshape(-1)[:n].reshape(n, 1)


def init_params(key, in_channels, param_dtype=jnp.float32):
    """Deterministic synthetic parameters matching LinkPredictor(in_channels).

    Weights are pre-transposed to (in, out); the src/dst weights are stacked
    into one (2C, C) block and their biases pre-summed (valid since
    lin_src(x) + lin_dst(y) = x@Ws + y@Wd + (bs + bd)).  `param_dtype`
    controls the MXU weight dtype (bf16 on all generations for the fast
    path); biases / final weight stay f32.
    """
    ks = jax.random.split(key, 6)
    c = in_channels
    scale = 1.0 / (c ** 0.5)
    u = lambda k, shape: jax.random.uniform(k, shape, jnp.float32, -scale, scale)
    w_src, b_src = u(ks[0], (c, c)), u(ks[1], (1, c))
    w_dst, b_dst = u(ks[2], (c, c)), u(ks[3], (1, c))
    w_final, b_final = u(ks[4], (1, c)), u(ks[5], (1, 1))
    return dict(
        w_cat=jnp.concatenate([w_src, w_dst], axis=0).astype(param_dtype),
        b_sum=b_src + b_dst,
        w_final=w_final,
        b_final=b_final,
        # Un-fused f32 copies kept only for the pure-JAX reference.
        w_src=w_src, b_src=b_src, w_dst=w_dst, b_dst=b_dst,
    )


def reference_forward(z_src, z_dst, p):
    h = z_src @ p["w_src"] + p["b_src"] + z_dst @ p["w_dst"] + p["b_dst"]
    h = jnp.maximum(h, 0.0)
    return h @ p["w_final"].T + p["b_final"]


if __name__ == "__main__":
    key = jax.random.PRNGKey(0)
    k_src, k_dst, k_param = jax.random.split(key, 3)

    N, C = 8, 32  # small batch of node-pair embeddings, in_channels = 32
    z_src = jax.random.normal(k_src, (N, C), jnp.float32)
    z_dst = jax.random.normal(k_dst, (N, C), jnp.float32)

    # f32 path.
    params = init_params(k_param, C, param_dtype=jnp.float32)
    out = jax.block_until_ready(link_predictor_forward(z_src, z_dst, params))
    ref = reference_forward(z_src, z_dst, params)
    assert out.shape == (N, 1)
    assert jnp.allclose(out, ref, atol=1e-4, rtol=1e-4)

    # bf16 fast path (bf16 activations + weights, f32 accumulation & VPU work).
    params_bf16 = init_params(k_param, C, param_dtype=jnp.bfloat16)
    out_bf16 = jax.block_until_ready(
        link_predictor_forward(z_src.astype(jnp.bfloat16),
                               z_dst.astype(jnp.bfloat16), params_bf16))
    assert out_bf16.shape == (N, 1)
    assert jnp.allclose(out_bf16, ref, atol=1e-1, rtol=5e-2)

    # Larger, non-multiple N: exercises the multi-step grid with a ragged
    # last block (no wrapper-side padding pass).
    N2 = 1030
    z_src2 = jax.random.normal(k_src, (N2, C), jnp.float32)
    z_dst2 = jax.random.normal(k_dst, (N2, C), jnp.float32)
    out2 = jax.block_until_ready(link_predictor_forward(z_src2, z_dst2, params))
    ref2 = reference_forward(z_src2, z_dst2, params)
    assert out2.shape == (N2, 1)
    assert jnp.allclose(out2, ref2, atol=1e-4, rtol=1e-4)

    print("KERNEL_OK")
</pallas_src>

<mosaic_0001>
module attributes {stable_mosaic.version = 11 : i64} {
  func.func @_link_predictor_kernel(%arg0: i32, %arg1: memref<128x32xf32, #tpu.memory_space<vmem>>, %arg2: memref<128x32xf32, #tpu.memory_space<vmem>>, %arg3: memref<64x32xf32, #tpu.memory_space<vmem>>, %arg4: memref<1x32xf32, #tpu.memory_space<vmem>>, %arg5: memref<1x32xf32, #tpu.memory_space<vmem>>, %arg6: memref<1x1xf32, #tpu.memory_space<smem>>, %arg7: memref<1x128xf32, #tpu.memory_space<vmem>>) attributes {dimension_semantics = [#tpu.dimension_semantics<parallel>], iteration_bounds = array<i64: 1>, scalar_prefetch = 0 : i64, scratch_operands = 0 : i64, tpu.core_type = #tpu.core_type<tc>, window_params = [{transform_indices = @transform_0, window_bounds = array<i64: 128, 32>}, {transform_indices = @transform_1, window_bounds = array<i64: 128, 32>}, {pipeline_mode = #tpu.pipeline_mode<synchronous>, transform_indices = @transform_2, window_bounds = array<i64: 64, 32>}, {pipeline_mode = #tpu.pipeline_mode<synchronous>, transform_indices = @transform_3, window_bounds = array<i64: 1, 32>}, {pipeline_mode = #tpu.pipeline_mode<synchronous>, transform_indices = @transform_4, window_bounds = array<i64: 1, 32>}, {transform_indices = @transform_5, window_bounds = array<i64: 1, 1>}, {transform_indices = @transform_6, window_bounds = array<i64: 1, 128>}]} {
    %c0 = arith.constant 0 : index
    %c0_0 = arith.constant 0 : index
    %0 = vector.load %arg1[%c0, %c0_0] : memref<128x32xf32, #tpu.memory_space<vmem>>, vector<128x32xf32>
    %c0_1 = arith.constant 0 : index
    %c0_2 = arith.constant 0 : index
    %1 = vector.load %arg3[%c0_1, %c0_2] : memref<64x32xf32, #tpu.memory_space<vmem>>, vector<32x32xf32>
    %cst = arith.constant dense<0.000000e+00> : vector<128x32xf32>
    %2 = tpu.matmul %0, %1, %cst {dimension_numbers = #tpu.dot_dimension_numbers<[1], [0], [0], [1], [0, 0, 1, 1], [], []>} : vector<128x32xf32>, vector<32x32xf32>, vector<128x32xf32> -> vector<128x32xf32>
    %c0_3 = arith.constant 0 : index
    %c0_4 = arith.constant 0 : index
    %3 = vector.load %arg2[%c0_3, %c0_4] : memref<128x32xf32, #tpu.memory_space<vmem>>, vector<128x32xf32>
    %c32 = arith.constant 32 : index
    %c0_5 = arith.constant 0 : index
    %4 = vector.load %arg3[%c32, %c0_5] : memref<64x32xf32, #tpu.memory_space<vmem>>, vector<32x32xf32>
    %cst_6 = arith.constant dense<0.000000e+00> : vector<128x32xf32>
    %5 = tpu.matmul %3, %4, %cst_6 {dimension_numbers = #tpu.dot_dimension_numbers<[1], [0], [0], [1], [0, 0, 1, 1], [], []>} : vector<128x32xf32>, vector<32x32xf32>, vector<128x32xf32> -> vector<128x32xf32>
    %6 = arith.addf %2, %5 : vector<128x32xf32>
    %c0_7 = arith.constant 0 : index
    %c0_8 = arith.constant 0 : index
    %7 = vector.load %arg4[%c0_7, %c0_8] : memref<1x32xf32, #tpu.memory_space<vmem>>, vector<1x32xf32>
    %8 = vector.broadcast %7 : vector<1x32xf32> to vector<128x32xf32>
    %9 = arith.addf %6, %8 : vector<128x32xf32>
    %cst_9 = arith.constant 0.000000e+00 : f32
    %10 = vector.broadcast %cst_9 : f32 to vector<128x32xf32>
    %11 = arith.maximumf %9, %10 : vector<128x32xf32>
    %c0_10 = arith.constant 0 : index
    %c0_11 = arith.constant 0 : index
    %12 = vector.load %arg5[%c0_10, %c0_11] : memref<1x32xf32, #tpu.memory_space<vmem>>, vector<1x32xf32>
    %cst_12 = arith.constant dense<0.000000e+00> : vector<1x128xf32>
    %13 = tpu.matmul %12, %11, %cst_12 {dimension_numbers = #tpu.dot_dimension_numbers<[1], [1], [0], [0], [0, 0, 1, 0], [], []>} : vector<1x32xf32>, vector<128x32xf32>, vector<1x128xf32> -> vector<1x128xf32>
    %c0_13 = arith.constant 0 : index
    %c0_14 = arith.constant 0 : index
    %14 = memref.load %arg6[%c0_13, %c0_14] : memref<1x1xf32, #tpu.memory_space<smem>>
    %15 = vector.broadcast %14 : f32 to vector<1x128xf32>
    %16 = arith.addf %13, %15 : vector<1x128xf32>
    %c0_15 = arith.constant 0 : index
    %c0_16 = arith.constant 0 : index
    %17 = vector.load %arg7[%c0_15, %c0_16] : memref<1x128xf32, #tpu.memory_space<vmem>>, vector<1x128xf32>
    tpu.vector_store %arg7[%c0_15, %c0_16], %16 {strides = array<i32>} : memref<1x128xf32, #tpu.memory_space<vmem>>, vector<1x128xf32>,
    return
  }
  func.func @transform_0(%arg0: i32) -> (i32, i32) {
    %c0_i32 = arith.constant 0 : i32
    %c0_i32_0 = arith.constant 0 : i32
    return %arg0, %c0_i32 : i32, i32
  }
  func.func @transform_1(%arg0: i32) -> (i32, i32) {
    %c0_i32 = arith.constant 0 : i32
    %c0_i32_0 = arith.constant 0 : i32
    return %arg0, %c0_i32 : i32, i32
  }
  func.func @transform_2(%arg0: i32) -> (i32, i32) {
    %c0_i32 = arith.constant 0 : i32
    %c0_i32_0 = arith.constant 0 : i32
    %c0_i32_1 = arith.constant 0 : i32
    return %c0_i32, %c0_i32_0 : i32, i32
  }
  func.func @transform_3(%arg0: i32) -> (i32, i32) {
    %c0_i32 = arith.constant 0 : i32
    %c0_i32_0 = arith.constant 0 : i32
    %c0_i32_1 = arith.constant 0 : i32
    return %c0_i32, %c0_i32_0 : i32, i32
  }
  func.func @transform_4(%arg0: i32) -> (i32, i32) {
    %c0_i32 = arith.constant 0 : i32
    %c0_i32_0 = arith.constant 0 : i32
    %c0_i32_1 = arith.constant 0 : i32
    return %c0_i32, %c0_i32_0 : i32, i32
  }
  func.func @transform_5(%arg0: i32) -> (i32, i32) {
    %c0_i32 = arith.constant 0 : i32
    %c0_i32_0 = arith.constant 0 : i32
    %c0_i32_1 = arith.constant 0 : i32
    return %c0_i32, %c0_i32_0 : i32, i32
  }
  func.func @transform_6(%arg0: i32) -> (i32, i32) {
    %c0_i32 = arith.constant 0 : i32
    %c0_i32_0 = arith.constant 0 : i32
    return %c0_i32, %arg0 : i32, i32
  }
}

</mosaic_0001>

<llo_original>
// kernel: tpu_custom_call.1
$region0: #{tpu_custom_call.1}
  #allocation0 [shape = 'u32[]', space=smem, size = 0x4, offset = 0x4, fixed_abs, tag = 'smem constant byte address 0x4 - core index']
  #allocation1 [shape = 'u32[144,128]{1,0:T(1,128)}', space=vmem, size = 0x12000, scoped, tag = 'internal scratch']
  #allocation2 [shape = 'f32[1,1]{1,0:T(1,128)S(6)}', space=smem, size = 0x200, scoped, tag = 'scoped memory for tpu_custom_call.1']
  %s0 = inlined_call_operand.vmem [shape: f32[8,32], index: 0, kind: input, shape index: {}]
  %s1 = inlined_call_operand.vmem [shape: f32[8,32], index: 1, kind: input, shape index: {}]
  %s2 = inlined_call_operand.vmem [shape: f32[64,32], index: 2, kind: input, shape index: {}]
  %s3 = inlined_call_operand.vmem [shape: f32[1,32], index: 3, kind: input, shape index: {}]
  %s4 = inlined_call_operand.vmem [shape: f32[1,32], index: 4, kind: input, shape index: {}]
  %s5 = inlined_call_operand.<no memory space> [shape: f32[1,1], index: 5, kind: input, shape index: {}]
  %s6 = inlined_call_operand.hbm [shape: f32[1,128], index: 6, kind: output, shape index: {}]
  %s7 = sld [smem:[#allocation0]]
  $region34: #{tpu_custom_call.1} parent=0
    _
  %s9 = ssub.s32 1, %s7
  %s10 = scalar_select 0, %s9, %s7
  %11 = sst [smem:[#allocation2]] %s5
  $region1: #{tpu_custom_call.1} parent=0
    #allocation3 [shape = 'u8[512]{0}', space=vmem, size = 0x400, scoped, tag = 'output window, operand 0, single buffered']
    #allocation4 [shape = 's32[1]{0}', space=sflag, size = 0x4, scoped, tag = 'scoped memory for tpu_custom_call.1']
    %12 = vsyncpa [#allocation4], 0
    // Predicated region
    $region2: #{tpu_custom_call.1} parent=1 // pred_check
      _
    $region3: #{tpu_custom_call.1} parent=1 // pred_check_branch
      %14 = sbr.rel (0) target = $region5
    $region4: #{tpu_custom_call.1} parent=1 // pred_region
      _
    $region5: #{tpu_custom_call.1} parent=1 // pred_fallthru
      _
    // Predicated region
    $region6: #{tpu_custom_call.1} parent=1 // pred_check
      _
    $region7: #{tpu_custom_call.1} parent=1 // pred_check_branch
      %16 = sbr.rel (0) target = $region9
    $region8: #{tpu_custom_call.1} parent=1 // pred_region
      _
    $region9: #{tpu_custom_call.1} parent=1 // pred_fallthru
      _
    // Predicated region
    $region10: #{tpu_custom_call.1} parent=1 // pred_check
      _
    $region11: #{tpu_custom_call.1} parent=1 // pred_check_branch
      %18 = sbr.rel (0) target = $region13
    $region12: #{tpu_custom_call.1} parent=1 // pred_region
      _
    $region13: #{tpu_custom_call.1} parent=1 // pred_fallthru
      _
    // Predicated region
    $region14: #{tpu_custom_call.1} parent=1 // pred_check
      _
    $region15: #{tpu_custom_call.1} parent=1 // pred_check_branch
      %20 = sbr.rel (0) target = $region17
    $region16: #{tpu_custom_call.1} parent=1 // pred_region
      _
    $region17: #{tpu_custom_call.1} parent=1 // pred_fallthru
      _
    // Predicated region
    $region18: #{tpu_custom_call.1} parent=1 // pred_check
      _
    $region19: #{tpu_custom_call.1} parent=1 // pred_check_branch
      %22 = sbr.rel (0) target = $region21
    $region20: #{tpu_custom_call.1} parent=1 // pred_region
      _
    $region21: #{tpu_custom_call.1} parent=1 // pred_fallthru
      _
    // Predicated region
    $region22: #{tpu_custom_call.1} parent=1 // pred_check
      _
    $region23: #{tpu_custom_call.1} parent=1 // pred_check_branch
      %24 = sbr.rel (0) target = $region25
    $region24: #{tpu_custom_call.1} parent=1 // pred_region
      _
    $region25: #{tpu_custom_call.1} parent=1 // pred_fallthru
      _
    %v25 = vld [vmem:[%s0] sm:$0xff]
    %v26 = vld [vmem:[%s0 + $0x8] sm:$0xff]
    %v27 = vld [vmem:[%s0 + $0x10] sm:$0xff]
    %v28 = vld [vmem:[%s0 + $0x18] sm:$0xff]
    %v29 = vld [vmem:[%s0 + $0x20] sm:$0xff]
    %v30 = vld [vmem:[%s0 + $0x28] sm:$0xff]
    %v31 = vld [vmem:[%s0 + $0x30] sm:$0xff]
    %v32 = vld [vmem:[%s0 + $0x38] sm:$0xff]
    %v33 = vld [vmem:[%s0 + $0x40] sm:$0xff]
    %v34 = vld [vmem:[%s0 + $0x48] sm:$0xff]
    %v35 = vld [vmem:[%s0 + $0x50] sm:$0xff]
    %v36 = vld [vmem:[%s0 + $0x58] sm:$0xff]
    %v37 = vld [vmem:[%s0 + $0x60] sm:$0xff]
    %v38 = vld [vmem:[%s0 + $0x68] sm:$0xff]
    %v39 = vld [vmem:[%s0 + $0x70] sm:$0xff]
    %v40 = vld [vmem:[%s0 + $0x78] sm:$0xff]
    %v41 = vld [vmem:[%s2] sm:$0xff]
    %v42 = vld [vmem:[%s2 + $0x8] sm:$0xff]
    %v43 = vld [vmem:[%s2 + $0x10] sm:$0xff]
    %v44 = vld [vmem:[%s2 + $0x18] sm:$0xff]
    %v45 = vld [vmem:[%s1] sm:$0xff]
    %v46 = vld [vmem:[%s1 + $0x8] sm:$0xff]
    %v47 = vld [vmem:[%s1 + $0x10] sm:$0xff]
    %v48 = vld [vmem:[%s1 + $0x18] sm:$0xff]
    %v49 = vld [vmem:[%s1 + $0x20] sm:$0xff]
    %v50 = vld [vmem:[%s1 + $0x28] sm:$0xff]
    %v51 = vld [vmem:[%s1 + $0x30] sm:$0xff]
    %v52 = vld [vmem:[%s1 + $0x38] sm:$0xff]
    %v53 = vld [vmem:[%s1 + $0x40] sm:$0xff]
    %v54 = vld [vmem:[%s1 + $0x48] sm:$0xff]
    %v55 = vld [vmem:[%s1 + $0x50] sm:$0xff]
    %v56 = vld [vmem:[%s1 + $0x58] sm:$0xff]
    %v57 = vld [vmem:[%s1 + $0x60] sm:$0xff]
    %v58 = vld [vmem:[%s1 + $0x68] sm:$0xff]
    %v59 = vld [vmem:[%s1 + $0x70] sm:$0xff]
    %v60 = vld [vmem:[%s1 + $0x78] sm:$0xff]
    %v61 = vld [vmem:[%s2 + $0x20] sm:$0xff]
    %v62 = vld [vmem:[%s2 + $0x28] sm:$0xff]
    %v63 = vld [vmem:[%s2 + $0x30] sm:$0xff]
    %v64 = vld [vmem:[%s2 + $0x38] sm:$0xff]
    %vm65 = vcmask 261120
    %v67 = vsel %vm65, %v45, 0
    %v70 = vsel %vm65, %v46, 0
    %v73 = vsel %vm65, %v47, 0
    %v76 = vsel %vm65, %v48, 0
    %v79 = vsel %vm65, %v49, 0
    %v82 = vsel %vm65, %v50, 0
    %v85 = vsel %vm65, %v51, 0
    %v88 = vsel %vm65, %v52, 0
    %v91 = vsel %vm65, %v53, 0
    %v94 = vsel %vm65, %v54, 0
    %v97 = vsel %vm65, %v55, 0
    %v100 = vsel %vm65, %v56, 0
    %v103 = vsel %vm65, %v57, 0
    %v106 = vsel %vm65, %v58, 0
    %v109 = vsel %vm65, %v59, 0
    %v112 = vsel %vm65, %v60, 0
    %114 = vmatprep.subr.mxu0 0.0
    %115 = vmatpush1.msra.mxu0 %v61
    %116 = vmatprep.subr.mxu0 0.0
    %117 = vmatpush1.msra.mxu0 %v62
    %118 = vmatprep.subr.mxu0 0.0
    %119 = vmatpush1.msra.mxu0 %v63
    %120 = vmatprep.subr.mxu0 0.0
    %121 = vmatpush1.msra.mxu0 %v64
    %122 = vmatprep.subr.mxu0 0.0
    %123 = vmatpush1.msra.mxu0 0.0
    %124 = vmatprep.subr.mxu0 0.0
    %125 = vmatpush1.msra.mxu0 0.0
    %126 = vmatprep.subr.mxu0 0.0
    %127 = vmatpush1.msra.mxu0 0.0
    %128 = vmatprep.subr.mxu0 0.0
    %129 = vmatpush1.msra.mxu0 0.0
    %130 = vmatprep.subr.mxu0 0.0
    %131 = vmatpush1.msra.mxu0 0.0
    %132 = vmatprep.subr.mxu0 0.0
    %133 = vmatpush1.msra.mxu0 0.0
    %134 = vmatprep.subr.mxu0 0.0
    %135 = vmatpush1.msra.mxu0 0.0
    %136 = vmatprep.subr.mxu0 0.0
    %137 = vmatpush1.msra.mxu0 0.0
    %138 = vmatprep.subr.mxu0 0.0
    %139 = vmatpush1.msra.mxu0 0.0
    %140 = vmatprep.subr.mxu0 0.0
    %141 = vmatpush1.msra.mxu0 0.0
    %142 = vmatprep.subr.mxu0 0.0
    %143 = vmatpush1.msra.mxu0 0.0
    %144 = vmatprep.subr.mxu0 0.0
    %145 = vmatpush1.msra.mxu0 0.0
    %146 = vmatprep.subr.mxu0 0.0
    %147 = vmatpush1.msra.mxu0 0.0
    %148 = vmatprep.subr.mxu0 0.0
    %149 = vmatpush1.msra.mxu0 0.0
    %150 = vmatprep.subr.mxu0 0.0
    %151 = vmatpush1.msra.mxu0 0.0
    %152 = vmatprep.subr.mxu0 0.0
    %153 = vmatpush1.msra.mxu0 0.0
    %154 = vmatprep.subr.mxu0 0.0
    %155 = vmatpush1.msra.mxu0 0.0
    %156 = vmatprep.subr.mxu0 0.0
    %157 = vmatpush1.msra.mxu0 0.0
    %158 = vmatprep.subr.mxu0 0.0
    %159 = vmatpush1.msra.mxu0 0.0
    %160 = vmatprep.subr.mxu0 0.0
    %161 = vmatpush1.msra.mxu0 0.0
    %162 = vmatprep.subr.mxu0 0.0
    %163 = vmatpush1.msra.mxu0 0.0
    %164 = vmatprep.subr.mxu0 0.0
    %165 = vmatpush1.msra.mxu0 0.0
    %166 = vmatprep.subr.mxu0 0.0
    %167 = vmatpush1.msra.mxu0 0.0
    %168 = vmatprep.subr.mxu0 0.0
    %169 = vmatpush1.msra.mxu0 0.0
    %170 = vmatprep.subr.mxu0 0.0
    %171 = vmatpush1.msra.mxu0 0.0
    %172 = vmatprep.subr.mxu0 0.0
    %173 = vmatpush1.msra.mxu0 0.0
    %174 = vmatprep.subr.mxu0 0.0
    %175 = vmatpush1.msra.mxu0 0.0
    %176 = vmatprep.subr.mxu0 0.0
    %177 = vmatpush1.msra.mxu0 0.0
    %178 = vmatprep.mubr.f32.mxu0 0.0
    %179 = vmatmul.mubr.f32.gmra.mrb[0].mxu0 %v67
    %v180 = vpop.f32.mrb[0].mxu0
    %v181 = vadd.f32 0.0, %v180
    %v182 = vpop.f32.mrb[0].mxu0
    %183 = vmatprep.mubr.f32.mxu0 0.0
    %184 = vmatmul.mubr.f32.gmra.mrb[0].mxu0 %v70
    %v185 = vpop.f32.mrb[0].mxu0
    %v186 = vadd.f32 0.0, %v185
    %v187 = vpop.f32.mrb[0].mxu0
    %188 = vmatprep.mubr.f32.mxu0 0.0
    %189 = vmatmul.mubr.f32.gmra.mrb[0].mxu0 %v73
    %v190 = vpop.f32.mrb[0].mxu0
    %v191 = vadd.f32 0.0, %v190
    %v192 = vpop.f32.mrb[0].mxu0
    %193 = vmatprep.mubr.f32.mxu0 0.0
    %194 = vmatmul.mubr.f32.gmra.mrb[0].mxu0 %v76
    %v195 = vpop.f32.mrb[0].mxu0
    %v196 = vadd.f32 0.0, %v195
    %v197 = vpop.f32.mrb[0].mxu0
    %198 = vmatprep.mubr.f32.mxu0 0.0
    %199 = vmatmul.mubr.f32.gmra.mrb[0].mxu0 %v79
    %v200 = vpop.f32.mrb[0].mxu0
    %v201 = vadd.f32 0.0, %v200
    %v202 = vpop.f32.mrb[0].mxu0
    %203 = vmatprep.mubr.f32.mxu0 0.0
    %204 = vmatmul.mubr.f32.gmra.mrb[0].mxu0 %v82
    %v205 = vpop.f32.mrb[0].mxu0
    %v206 = vadd.f32 0.0, %v205
    %v207 = vpop.f32.mrb[0].mxu0
    %208 = vmatprep.mubr.f32.mxu0 0.0
    %209 = vmatmul.mubr.f32.gmra.mrb[0].mxu0 %v85
    %v210 = vpop.f32.mrb[0].mxu0
    %v211 = vadd.f32 0.0, %v210
    %v212 = vpop.f32.mrb[0].mxu0
    %213 = vmatprep.mubr.f32.mxu0 0.0
    %214 = vmatmul.mubr.f32.gmra.mrb[0].mxu0 %v88
    %v215 = vpop.f32.mrb[0].mxu0
    %v216 = vadd.f32 0.0, %v215
    %v217 = vpop.f32.mrb[0].mxu0
    %218 = vmatprep.mubr.f32.mxu0 0.0
    %219 = vmatmul.mubr.f32.gmra.mrb[0].mxu0 %v91
    %v220 = vpop.f32.mrb[0].mxu0
    %v221 = vadd.f32 0.0, %v220
    %v222 = vpop.f32.mrb[0].mxu0
    %223 = vmatprep.mubr.f32.mxu0 0.0
    %224 = vmatmul.mubr.f32.gmra.mrb[0].mxu0 %v94
    %v225 = vpop.f32.mrb[0].mxu0
    %v226 = vadd.f32 0.0, %v225
    %v227 = vpop.f32.mrb[0].mxu0
    %228 = vmatprep.mubr.f32.mxu0 0.0
    %229 = vmatmul.mubr.f32.gmra.mrb[0].mxu0 %v97
    %v230 = vpop.f32.mrb[0].mxu0
    %v231 = vadd.f32 0.0, %v230
    %v232 = vpop.f32.mrb[0].mxu0
    %233 = vmatprep.mubr.f32.mxu0 0.0
    %234 = vmatmul.mubr.f32.gmra.mrb[0].mxu0 %v100
    %v235 = vpop.f32.mrb[0].mxu0
    %v236 = vadd.f32 0.0, %v235
    %v237 = vpop.f32.mrb[0].mxu0
    %238 = vmatprep.mubr.f32.mxu0 0.0
    %239 = vmatmul.mubr.f32.gmra.mrb[0].mxu0 %v103
    %v240 = vpop.f32.mrb[0].mxu0
    %v241 = vadd.f32 0.0, %v240
    %v242 = vpop.f32.mrb[0].mxu0
    %243 = vmatprep.mubr.f32.mxu0 0.0
    %244 = vmatmul.mubr.f32.gmra.mrb[0].mxu0 %v106
    %v245 = vpop.f32.mrb[0].mxu0
    %v246 = vadd.f32 0.0, %v245
    %v247 = vpop.f32.mrb[0].mxu0
    %248 = vmatprep.mubr.f32.mxu0 0.0
    %249 = vmatmul.mubr.f32.gmra.mrb[0].mxu0 %v109
    %v250 = vpop.f32.mrb[0].mxu0
    %v251 = vadd.f32 0.0, %v250
    %v252 = vpop.f32.mrb[0].mxu0
    %253 = vmatprep.mubr.f32.mxu0 0.0
    %254 = vmatmul.mubr.f32.gmra.mrb[0].mxu0 %v112
    %v255 = vpop.f32.mrb[0].mxu0
    %v256 = vadd.f32 0.0, %v255
    %v257 = vpop.f32.mrb[0].mxu0
    %258 = vdwg.mxu0
    %v260 = vsel %vm65, %v25, 0
    %v263 = vsel %vm65, %v26, 0
    %v266 = vsel %vm65, %v27, 0
    %v269 = vsel %vm65, %v28, 0
    %v272 = vsel %vm65, %v29, 0
    %v275 = vsel %vm65, %v30, 0
    %v278 = vsel %vm65, %v31, 0
    %v281 = vsel %vm65, %v32, 0
    %v284 = vsel %vm65, %v33, 0
    %v287 = vsel %vm65, %v34, 0
    %v290 = vsel %vm65, %v35, 0
    %v293 = vsel %vm65, %v36, 0
    %v296 = vsel %vm65, %v37, 0
    %v299 = vsel %vm65, %v38, 0
    %v302 = vsel %vm65, %v39, 0
    %v305 = vsel %vm65, %v40, 0
    %307 = vmatprep.subr.mxu0 0.0
    %308 = vmatpush1.msra.mxu0 %v41
    %309 = vmatprep.subr.mxu0 0.0
    %310 = vmatpush1.msra.mxu0 %v42
    %311 = vmatprep.subr.mxu0 0.0
    %312 = vmatpush1.msra.mxu0 %v43
    %313 = vmatprep.subr.mxu0 0.0
    %314 = vmatpush1.msra.mxu0 %v44
    %315 = vmatprep.subr.mxu0 0.0
    %316 = vmatpush1.msra.mxu0 0.0
    %317 = vmatprep.subr.mxu0 0.0
    %318 = vmatpush1.msra.mxu0 0.0
    %319 = vmatprep.subr.mxu0 0.0
    %320 = vmatpush1.msra.mxu0 0.0
    %321 = vmatprep.subr.mxu0 0.0
    %322 = vmatpush1.msra.mxu0 0.0
    %323 = vmatprep.subr.mxu0 0.0
    %324 = vmatpush1.msra.mxu0 0.0
    %325 = vmatprep.subr.mxu0 0.0
    %326 = vmatpush1.msra.mxu0 0.0
    %327 = vmatprep.subr.mxu0 0.0
    %328 = vmatpush1.msra.mxu0 0.0
    %329 = vmatprep.subr.mxu0 0.0
    %330 = vmatpush1.msra.mxu0 0.0
    %331 = vmatprep.subr.mxu0 0.0
    %332 = vmatpush1.msra.mxu0 0.0
    %333 = vmatprep.subr.mxu0 0.0
    %334 = vmatpush1.msra.mxu0 0.0
    %335 = vmatprep.subr.mxu0 0.0
    %336 = vmatpush1.msra.mxu0 0.0
    %337 = vmatprep.subr.mxu0 0.0
    %338 = vmatpush1.msra.mxu0 0.0
    %339 = vmatprep.subr.mxu0 0.0
    %340 = vmatpush1.msra.mxu0 0.0
    %341 = vmatprep.subr.mxu0 0.0
    %342 = vmatpush1.msra.mxu0 0.0
    %343 = vmatprep.subr.mxu0 0.0
    %344 = vmatpush1.msra.mxu0 0.0
    %345 = vmatprep.subr.mxu0 0.0
    %346 = vmatpush1.msra.mxu0 0.0
    %347 = vmatprep.subr.mxu0 0.0
    %348 = vmatpush1.msra.mxu0 0.0
    %349 = vmatprep.subr.mxu0 0.0
    %350 = vmatpush1.msra.mxu0 0.0
    %351 = vmatprep.subr.mxu0 0.0
    %352 = vmatpush1.msra.mxu0 0.0
    %353 = vmatprep.subr.mxu0 0.0
    %354 = vmatpush1.msra.mxu0 0.0
    %355 = vmatprep.subr.mxu0 0.0
    %356 = vmatpush1.msra.mxu0 0.0
    %357 = vmatprep.subr.mxu0 0.0
    %358 = vmatpush1.msra.mxu0 0.0
    %359 = vmatprep.subr.mxu0 0.0
    %360 = vmatpush1.msra.mxu0 0.0
    %361 = vmatprep.subr.mxu0 0.0
    %362 = vmatpush1.msra.mxu0 0.0
    %363 = vmatprep.subr.mxu0 0.0
    %364 = vmatpush1.msra.mxu0 0.0
    %365 = vmatprep.subr.mxu0 0.0
    %366 = vmatpush1.msra.mxu0 0.0
    %367 = vmatprep.subr.mxu0 0.0
    %368 = vmatpush1.msra.mxu0 0.0
    %369 = vmatprep.subr.mxu0 0.0
    %370 = vmatpush1.msra.mxu0 0.0
    %371 = vmatprep.mubr.f32.mxu0 0.0
    %372 = vmatmul.mubr.f32.gmra.mrb[0].mxu0 %v260
    %v373 = vpop.f32.mrb[0].mxu0
    %v374 = vadd.f32 %v181, %v373
    %v375 = vpop.f32.mrb[0].mxu0
    %376 = vmatprep.mubr.f32.mxu0 0.0
    %377 = vmatmul.mubr.f32.gmra.mrb[0].mxu0 %v263
    %v378 = vpop.f32.mrb[0].mxu0
    %v379 = vadd.f32 %v186, %v378
    %v380 = vpop.f32.mrb[0].mxu0
    %381 = vmatprep.mubr.f32.mxu0 0.0
    %382 = vmatmul.mubr.f32.gmra.mrb[0].mxu0 %v266
    %v383 = vpop.f32.mrb[0].mxu0
    %v384 = vadd.f32 %v191, %v383
    %v385 = vpop.f32.mrb[0].mxu0
    %386 = vmatprep.mubr.f32.mxu0 0.0
    %387 = vmatmul.mubr.f32.gmra.mrb[0].mxu0 %v269
    %v388 = vpop.f32.mrb[0].mxu0
    %v389 = vadd.f32 %v196, %v388
    %v390 = vpop.f32.mrb[0].mxu0
    %391 = vmatprep.mubr.f32.mxu0 0.0
    %392 = vmatmul.mubr.f32.gmra.mrb[0].mxu0 %v272
    %v393 = vpop.f32.mrb[0].mxu0
    %v394 = vadd.f32 %v201, %v393
    %v395 = vpop.f32.mrb[0].mxu0
    %396 = vmatprep.mubr.f32.mxu0 0.0
    %397 = vmatmul.mubr.f32.gmra.mrb[0].mxu0 %v275
    %v398 = vpop.f32.mrb[0].mxu0
    %v399 = vadd.f32 %v206, %v398
    %v400 = vpop.f32.mrb[0].mxu0
    %401 = vmatprep.mubr.f32.mxu0 0.0
    %402 = vmatmul.mubr.f32.gmra.mrb[0].mxu0 %v278
    %v403 = vpop.f32.mrb[0].mxu0
    %v404 = vadd.f32 %v211, %v403
    %v405 = vpop.f32.mrb[0].mxu0
    %406 = vmatprep.mubr.f32.mxu0 0.0
    %407 = vmatmul.mubr.f32.gmra.mrb[0].mxu0 %v281
    %v408 = vpop.f32.mrb[0].mxu0
    %v409 = vadd.f32 %v216, %v408
    %v410 = vpop.f32.mrb[0].mxu0
    %411 = vmatprep.mubr.f32.mxu0 0.0
    %412 = vmatmul.mubr.f32.gmra.mrb[0].mxu0 %v284
    %v413 = vpop.f32.mrb[0].mxu0
    %v414 = vadd.f32 %v221, %v413
    %v415 = vpop.f32.mrb[0].mxu0
    %416 = vmatprep.mubr.f32.mxu0 0.0
    %417 = vmatmul.mubr.f32.gmra.mrb[0].mxu0 %v287
    %v418 = vpop.f32.mrb[0].mxu0
    %v419 = vadd.f32 %v226, %v418
    %v420 = vpop.f32.mrb[0].mxu0
    %421 = vmatprep.mubr.f32.mxu0 0.0
    %422 = vmatmul.mubr.f32.gmra.mrb[0].mxu0 %v290
    %v423 = vpop.f32.mrb[0].mxu0
    %v424 = vadd.f32 %v231, %v423
    %v425 = vpop.f32.mrb[0].mxu0
    %426 = vmatprep.mubr.f32.mxu0 0.0
    %427 = vmatmul.mubr.f32.gmra.mrb[0].mxu0 %v293
    %v428 = vpop.f32.mrb[0].mxu0
    %v429 = vadd.f32 %v236, %v428
    %v430 = vpop.f32.mrb[0].mxu0
    %431 = vmatprep.mubr.f32.mxu0 0.0
    %432 = vmatmul.mubr.f32.gmra.mrb[0].mxu0 %v296
    %v433 = vpop.f32.mrb[0].mxu0
    %v434 = vadd.f32 %v241, %v433
    %v435 = vpop.f32.mrb[0].mxu0
    %436 = vmatprep.mubr.f32.mxu0 0.0
    %437 = vmatmul.mubr.f32.gmra.mrb[0].mxu0 %v299
    %v438 = vpop.f32.mrb[0].mxu0
    %v439 = vadd.f32 %v246, %v438
    %v440 = vpop.f32.mrb[0].mxu0
    %441 = vmatprep.mubr.f32.mxu0 0.0
    %442 = vmatmul.mubr.f32.gmra.mrb[0].mxu0 %v302
    %v443 = vpop.f32.mrb[0].mxu0
    %v444 = vadd.f32 %v251, %v443
    %v445 = vpop.f32.mrb[0].mxu0
    %446 = vmatprep.mubr.f32.mxu0 0.0
    %447 = vmatmul.mubr.f32.gmra.mrb[0].mxu0 %v305
    %v448 = vpop.f32.mrb[0].mxu0
    %v449 = vadd.f32 %v256, %v448
    %v450 = vpop.f32.mrb[0].mxu0
    %451 = vdwg.mxu0
    %v452 = vld [vmem:[%s3] sm:$0x1]
    %v454 = vlaneseq
    %v455 = vshrl.u32 %v454, 7
    %v456 = vsub.s32 0, %v455
    %v457 = vrot.slane %v452, %v456
    %v459 = vadd.f32 %v374, %v457
    %v460 = vadd.f32 %v379, %v457
    %v461 = vadd.f32 %v384, %v457
    %v462 = vadd.f32 %v389, %v457
    %v463 = vadd.f32 %v394, %v457
    %v464 = vadd.f32 %v399, %v457
    %v465 = vadd.f32 %v404, %v457
    %v466 = vadd.f32 %v409, %v457
    %v467 = vadd.f32 %v414, %v457
    %v468 = vadd.f32 %v419, %v457
    %v469 = vadd.f32 %v424, %v457
    %v470 = vadd.f32 %v429, %v457
    %v471 = vadd.f32 %v434, %v457
    %v472 = vadd.f32 %v439, %v457
    %v473 = vadd.f32 %v444, %v457
    %v474 = vadd.f32 %v449, %v457
    %v475 = vmax.f32 %v459, 0.0
    %v476 = vmax.f32 %v460, 0.0
    %v477 = vmax.f32 %v461, 0.0
    %v478 = vmax.f32 %v462, 0.0
    %v479 = vmax.f32 %v463, 0.0
    %v480 = vmax.f32 %v464, 0.0
    %v481 = vmax.f32 %v465, 0.0
    %v482 = vmax.f32 %v466, 0.0
    %v483 = vmax.f32 %v467, 0.0
    %v484 = vmax.f32 %v468, 0.0
    %v485 = vmax.f32 %v469, 0.0
    %v486 = vmax.f32 %v470, 0.0
    %v487 = vmax.f32 %v471, 0.0
    %v488 = vmax.f32 %v472, 0.0
    %v489 = vmax.f32 %v473, 0.0
    %v490 = vmax.f32 %v474, 0.0
    %v491 = vld [vmem:[%s4] sm:$0x1]
    %s492 = sld [smem:[#allocation2]]
    %v493 = vstv %s492
    %v495 = vsel %vm65, %v491, 0
    %v498 = vsel %vm65, %v475, 0
    %v501 = vsel %vm65, %v476, 0
    %v504 = vsel %vm65, %v477, 0
    %v507 = vsel %vm65, %v478, 0
    %v510 = vsel %vm65, %v479, 0
    %v513 = vsel %vm65, %v480, 0
    %v516 = vsel %vm65, %v481, 0
    %v519 = vsel %vm65, %v482, 0
    %v522 = vsel %vm65, %v483, 0
    %v525 = vsel %vm65, %v484, 0
    %v528 = vsel %vm65, %v485, 0
    %v531 = vsel %vm65, %v486, 0
    %v534 = vsel %vm65, %v487, 0
    %v537 = vsel %vm65, %v488, 0
    %v540 = vsel %vm65, %v489, 0
    %v543 = vsel %vm65, %v490, 0
    %545 = vmatprep.subr.mxu0 0.0
    %546 = vmatpush1.xpose.msra.mxu0 %v498
    %547 = vmatprep.subr.mxu0 0.0
    %548 = vmatpush1.xpose.msra.mxu0 %v501
    %549 = vmatprep.subr.mxu0 0.0
    %550 = vmatpush1.xpose.msra.mxu0 %v504
    %551 = vmatprep.subr.mxu0 0.0
    %552 = vmatpush1.xpose.msra.mxu0 %v507
    %553 = vmatprep.subr.mxu0 0.0
    %554 = vmatpush1.xpose.msra.mxu0 %v510
    %555 = vmatprep.subr.mxu0 0.0
    %556 = vmatpush1.xpose.msra.mxu0 %v513
    %557 = vmatprep.subr.mxu0 0.0
    %558 = vmatpush1.xpose.msra.mxu0 %v516
    %559 = vmatprep.subr.mxu0 0.0
    %560 = vmatpush1.xpose.msra.mxu0 %v519
    %561 = vmatprep.subr.mxu0 0.0
    %562 = vmatpush1.xpose.msra.mxu0 %v522
    %563 = vmatprep.subr.mxu0 0.0
    %564 = vmatpush1.xpose.msra.mxu0 %v525
    %565 = vmatprep.subr.mxu0 0.0
    %566 = vmatpush1.xpose.msra.mxu0 %v528
    %567 = vmatprep.subr.mxu0 0.0
    %568 = vmatpush1.xpose.msra.mxu0 %v531
    %569 = vmatprep.subr.mxu0 0.0
    %570 = vmatpush1.xpose.msra.mxu0 %v534
    %571 = vmatprep.subr.mxu0 0.0
    %572 = vmatpush1.xpose.msra.mxu0 %v537
    %573 = vmatprep.subr.mxu0 0.0
    %574 = vmatpush1.xpose.msra.mxu0 %v540
    %575 = vmatprep.subr.mxu0 0.0
    %576 = vmatpush1.xpose.msra.mxu0 %v543
    %577 = vmatprep.subr.mxu0 0.0
    %578 = vmatpush1.xpose.msra.mxu0 0.0
    %579 = vmatprep.subr.mxu0 0.0
    %580 = vmatpush1.xpose.msra.mxu0 0.0
    %581 = vmatprep.subr.mxu0 0.0
    %582 = vmatpush1.xpose.msra.mxu0 0.0
    %583 = vmatprep.subr.mxu0 0.0
    %584 = vmatpush1.xpose.msra.mxu0 0.0
    %585 = vmatprep.subr.mxu0 0.0
    %586 = vmatpush1.xpose.msra.mxu0 0.0
    %587 = vmatprep.subr.mxu0 0.0
    %588 = vmatpush1.xpose.msra.mxu0 0.0
    %589 = vmatprep.subr.mxu0 0.0
    %590 = vmatpush1.xpose.msra.mxu0 0.0
    %591 = vmatprep.subr.mxu0 0.0
    %592 = vmatpush1.xpose.msra.mxu0 0.0
    %593 = vmatprep.subr.mxu0 0.0
    %594 = vmatpush1.xpose.msra.mxu0 0.0
    %595 = vmatprep.subr.mxu0 0.0
    %596 = vmatpush1.xpose.msra.mxu0 0.0
    %597 = vmatprep.subr.mxu0 0.0
    %598 = vmatpush1.xpose.msra.mxu0 0.0
    %599 = vmatprep.subr.mxu0 0.0
    %600 = vmatpush1.xpose.msra.mxu0 0.0
    %601 = vmatprep.subr.mxu0 0.0
    %602 = vmatpush1.xpose.msra.mxu0 0.0
    %603 = vmatprep.subr.mxu0 0.0
    %604 = vmatpush1.xpose.msra.mxu0 0.0
    %605 = vmatprep.subr.mxu0 0.0
    %606 = vmatpush1.xpose.msra.mxu0 0.0
    %607 = vmatprep.subr.mxu0 0.0
    %608 = vmatpush1.xpose.msra.mxu0 0.0
    %609 = vmatprep.mubr.f32.mxu0 0.0
    %610 = vmatmul.mubr.f32.gmra.mrb[0].mxu0 %v495
    %v611 = vpop.f32.mrb[0].mxu0
    %v612 = vadd.f32 %v493, %v611
    %v613 = vpop.f32.mrb[0].mxu0
    %614 = vdwg.mxu0
    %615 = vst [vmem:[#allocation3] sm:$0x1] %v612
    // Predicated region
    $region26: #{tpu_custom_call.1} parent=1 // pred_check
      _
    $region27: #{tpu_custom_call.1} parent=1 // pred_check_branch
      %617 = sbr.rel (0) target = $region29
    $region28: #{tpu_custom_call.1} parent=1 // pred_region
      %s619 = ssub.s32 16, 16
      %620 = vsyncadd [#allocation4], %s619
      %s622 = sshll.u32 [#allocation3], 4
      %s623 = int_to_ptr.vmem [resolvable:$true] %s622
      %625 = dma.vmem_to_hbm [thread:$0]  %s623, 16, %s6, [#allocation4]
    $region29: #{tpu_custom_call.1} parent=1 // pred_fallthru
      _
    // Predicated region
    $region30: #{tpu_custom_call.1} parent=1 // pred_check
      _
    $region31: #{tpu_custom_call.1} parent=1 // pred_check_branch
      %627 = sbr.rel (0) target = $region33
    $region32: #{tpu_custom_call.1} parent=1 // pred_region
      %628 = dma.done [#allocation4], 16
    $region33: #{tpu_custom_call.1} parent=1 // pred_fallthru
      _
    %629 = vsyncpa [#allocation4], 1

</llo_original>
